<compile_context>
chip_gen: v7x
topology: tpu7x:2x2x1
jax: 0.10.0
libtpu: 0.0.40
codegen_flags: <defaults>
</compile_context>

<pallas_src>
import jax
import jax.numpy as jnp
from jax.experimental import pallas as pl
from jax.experimental.pallas import tpu as pltpu


def qnet_kernel(x_ref, w1_ref, b1_ref, w2_ref, b2_ref, w3_ref, b3_ref, o_ref):
    # x_ref : [8,  TB]   features on sublanes, batch tile on the lane axis
    # w*    : [out, in]  (torch nn.Linear layout)
    # b*    : [out, 1]   broadcasts over the lane (batch) axis
    # o_ref : [1,  TB]
    x = x_ref[...]
    # fc1 + tanh : [32, TB]
    h1 = jnp.tanh(
        jnp.dot(w1_ref[...], x, preferred_element_type=jnp.float32) + b1_ref[...]
    )
    # fc2 + tanh : [64, TB]
    h2 = jnp.tanh(
        jnp.dot(w2_ref[...], h1, preferred_element_type=jnp.float32) + b2_ref[...]
    )
    # out (no activation) : [1, TB], lane-dense store
    # TODO(synk): on v6e/v7x a bf16 h1/h2 + bf16 tanh would halve VPU/EUP work;
    # kept f32 here so the same kernel is optimal-safe on v5e.
    o_ref[...] = (
        jnp.dot(w3_ref[...], h2, preferred_element_type=jnp.float32) + b3_ref[...]
    ).astype(o_ref.dtype)


def q_network_forward(x, params, *, tb=512):
    """x: [B, 8] float32 -> [B, 1] float32 (same semantics as the torch module)."""
    w1, b1, w2, b2, w3, b3 = params
    B = x.shape[0]

    # Batch sits on the 128-lane axis: round B up to a lane multiple, then pick
    # a tile TB (<= 512 rows-worth of batch) that evenly divides the padded B.
    B_lane = ((B + 127) // 128) * 128
    tb = min(tb, B_lane)
    B_pad = pl.cdiv(B_lane, tb) * tb

    # Feature-major transpose + zero-pad of the batch (padded columns are
    # sliced off below; tanh(0)+bias is finite so no NaN contamination).
    x_t = jnp.zeros((8, B_pad), jnp.float32).at[:, :B].set(x.T.astype(jnp.float32))

    # Biases as [out, 1] so they broadcast across the lane (batch) axis.
    b1c = b1.reshape(-1, 1).astype(jnp.float32)
    b2c = b2.reshape(-1, 1).astype(jnp.float32)
    b3c = b3.reshape(-1, 1).astype(jnp.float32)

    grid = (B_pad // tb,)
    resident = lambda a: pl.BlockSpec(a.shape, lambda i: (0, 0))  # stays in VMEM

    out_t = pl.pallas_call(
        qnet_kernel,
        out_shape=jax.ShapeDtypeStruct((1, B_pad), jnp.float32),
        grid_spec=pltpu.PrefetchScalarGridSpec(
            num_scalar_prefetch=0,
            grid=grid,
            in_specs=[
                pl.BlockSpec((8, tb), lambda i: (0, i)),   # x tile, pipelined
                resident(w1), resident(b1c),
                resident(w2), resident(b2c),
                resident(w3), resident(b3c),
            ],
            out_specs=pl.BlockSpec((1, tb), lambda i: (0, i)),
        ),
        compiler_params=pltpu.CompilerParams(
            # Batch tiles are independent -> shard across both TCs on v7x.
            dimension_semantics=("parallel",),
        ),
    )(x_t, w1.astype(jnp.float32), b1c,
      w2.astype(jnp.float32), b2c,
      w3.astype(jnp.float32), b3c)

    # [1, B_pad] -> [B, 1]
    return out_t[:, :B].T


def init_params(key):
    """Deterministic init matching torch nn.Linear shapes ([out, in] weights)."""
    k1, k2, k3, k4, k5, k6 = jax.random.split(key, 6)

    def uniform(k, shape, fan_in):
        bound = 1.0 / jnp.sqrt(fan_in)
        return jax.random.uniform(k, shape, jnp.float32, -bound, bound)

    w1 = uniform(k1, (32, 8), 8.0)
    b1 = uniform(k2, (32,), 8.0)
    w2 = uniform(k3, (64, 32), 32.0)
    b2 = uniform(k4, (64,), 32.0)
    w3 = uniform(k5, (1, 64), 64.0)
    b3 = uniform(k6, (1,), 64.0)
    return (w1, b1, w2, b2, w3, b3)


if __name__ == "__main__":
    key = jax.random.PRNGKey(0)
    kx, kp = jax.random.split(key)

    # Small batch of 8-dim state vectors (LunarLander-style DQN input).
    # Note: at B=8 a Pallas kernel is launch-overhead-dominated; this size is
    # only for the correctness demo — the kernel is built for large batches.
    B = 8
    x = jax.random.normal(kx, (B, 8), jnp.float32)
    params = init_params(kp)

    fwd = jax.jit(q_network_forward, static_argnames=("tb",))
    out = jax.block_until_ready(fwd(x, params))

    # Reference check in plain JAX (torch semantics: y = x @ W.T + b).
    w1, b1, w2, b2, w3, b3 = params
    ref = jnp.tanh(x @ w1.T + b1)
    ref = jnp.tanh(ref @ w2.T + b2)
    ref = ref @ w3.T + b3

    assert out.shape == (B, 1)
    assert jnp.allclose(out, ref, atol=1e-5, rtol=1e-5)

    print("KERNEL_OK")
</pallas_src>

<mosaic_0001>
module attributes {stable_mosaic.version = 11 : i64} {
  func.func @qnet_kernel(%arg0: i32, %arg1: memref<8x128xf32, #tpu.memory_space<vmem>>, %arg2: memref<32x8xf32, #tpu.memory_space<vmem>>, %arg3: memref<32x1xf32, #tpu.memory_space<vmem>>, %arg4: memref<64x32xf32, #tpu.memory_space<vmem>>, %arg5: memref<64x1xf32, #tpu.memory_space<vmem>>, %arg6: memref<1x64xf32, #tpu.memory_space<vmem>>, %arg7: memref<1x1xf32, #tpu.memory_space<vmem>>, %arg8: memref<1x128xf32, #tpu.memory_space<vmem>>) attributes {dimension_semantics = [#tpu.dimension_semantics<parallel>], iteration_bounds = array<i64: 1>, scalar_prefetch = 0 : i64, scratch_operands = 0 : i64, tpu.core_type = #tpu.core_type<tc>, window_params = [{transform_indices = @transform_0, window_bounds = array<i64: 8, 128>}, {pipeline_mode = #tpu.pipeline_mode<synchronous>, transform_indices = @transform_1, window_bounds = array<i64: 32, 8>}, {pipeline_mode = #tpu.pipeline_mode<synchronous>, transform_indices = @transform_2, window_bounds = array<i64: 32, 1>}, {pipeline_mode = #tpu.pipeline_mode<synchronous>, transform_indices = @transform_3, window_bounds = array<i64: 64, 32>}, {pipeline_mode = #tpu.pipeline_mode<synchronous>, transform_indices = @transform_4, window_bounds = array<i64: 64, 1>}, {pipeline_mode = #tpu.pipeline_mode<synchronous>, transform_indices = @transform_5, window_bounds = array<i64: 1, 64>}, {pipeline_mode = #tpu.pipeline_mode<synchronous>, transform_indices = @transform_6, window_bounds = array<i64: 1, 1>}, {transform_indices = @transform_7, window_bounds = array<i64: 1, 128>}]} {
    %c0 = arith.constant 0 : index
    %c0_0 = arith.constant 0 : index
    %0 = vector.load %arg1[%c0, %c0_0] : memref<8x128xf32, #tpu.memory_space<vmem>>, vector<8x128xf32>
    %c0_1 = arith.constant 0 : index
    %c0_2 = arith.constant 0 : index
    %1 = vector.load %arg2[%c0_1, %c0_2] : memref<32x8xf32, #tpu.memory_space<vmem>>, vector<32x8xf32>
    %cst = arith.constant dense<0.000000e+00> : vector<32x128xf32>
    %2 = tpu.matmul %1, %0, %cst {dimension_numbers = #tpu.dot_dimension_numbers<[1], [0], [0], [1], [0, 0, 1, 1], [], []>} : vector<32x8xf32>, vector<8x128xf32>, vector<32x128xf32> -> vector<32x128xf32>
    %c0_3 = arith.constant 0 : index
    %c0_4 = arith.constant 0 : index
    %3 = vector.load %arg3[%c0_3, %c0_4] : memref<32x1xf32, #tpu.memory_space<vmem>>, vector<32x1xf32>
    %4 = vector.broadcast %3 : vector<32x1xf32> to vector<32x128xf32>
    %5 = arith.addf %2, %4 : vector<32x128xf32>
    %6 = math.tanh %5 : vector<32x128xf32>
    %c0_5 = arith.constant 0 : index
    %c0_6 = arith.constant 0 : index
    %7 = vector.load %arg4[%c0_5, %c0_6] : memref<64x32xf32, #tpu.memory_space<vmem>>, vector<64x32xf32>
    %cst_7 = arith.constant dense<0.000000e+00> : vector<64x128xf32>
    %8 = tpu.matmul %7, %6, %cst_7 {dimension_numbers = #tpu.dot_dimension_numbers<[1], [0], [0], [1], [0, 0, 1, 1], [], []>} : vector<64x32xf32>, vector<32x128xf32>, vector<64x128xf32> -> vector<64x128xf32>
    %c0_8 = arith.constant 0 : index
    %c0_9 = arith.constant 0 : index
    %9 = vector.load %arg5[%c0_8, %c0_9] : memref<64x1xf32, #tpu.memory_space<vmem>>, vector<64x1xf32>
    %10 = vector.broadcast %9 : vector<64x1xf32> to vector<64x128xf32>
    %11 = arith.addf %8, %10 : vector<64x128xf32>
    %12 = math.tanh %11 : vector<64x128xf32>
    %c0_10 = arith.constant 0 : index
    %c0_11 = arith.constant 0 : index
    %13 = vector.load %arg6[%c0_10, %c0_11] : memref<1x64xf32, #tpu.memory_space<vmem>>, vector<1x64xf32>
    %cst_12 = arith.constant dense<0.000000e+00> : vector<1x128xf32>
    %14 = tpu.matmul %13, %12, %cst_12 {dimension_numbers = #tpu.dot_dimension_numbers<[1], [0], [0], [1], [0, 0, 1, 1], [], []>} : vector<1x64xf32>, vector<64x128xf32>, vector<1x128xf32> -> vector<1x128xf32>
    %c0_13 = arith.constant 0 : index
    %c0_14 = arith.constant 0 : index
    %15 = vector.load %arg7[%c0_13, %c0_14] : memref<1x1xf32, #tpu.memory_space<vmem>>, vector<1x1xf32>
    %16 = vector.broadcast %15 : vector<1x1xf32> to vector<1x128xf32>
    %17 = arith.addf %14, %16 : vector<1x128xf32>
    %c0_15 = arith.constant 0 : index
    %c0_16 = arith.constant 0 : index
    %18 = vector.load %arg8[%c0_15, %c0_16] : memref<1x128xf32, #tpu.memory_space<vmem>>, vector<1x128xf32>
    tpu.vector_store %arg8[%c0_15, %c0_16], %17 {strides = array<i32>} : memref<1x128xf32, #tpu.memory_space<vmem>>, vector<1x128xf32>,
    return
  }
  func.func @transform_0(%arg0: i32) -> (i32, i32) {
    %c0_i32 = arith.constant 0 : i32
    %c0_i32_0 = arith.constant 0 : i32
    return %c0_i32, %arg0 : i32, i32
  }
  func.func @transform_1(%arg0: i32) -> (i32, i32) {
    %c0_i32 = arith.constant 0 : i32
    %c0_i32_0 = arith.constant 0 : i32
    %c0_i32_1 = arith.constant 0 : i32
    return %c0_i32, %c0_i32_0 : i32, i32
  }
  func.func @transform_2(%arg0: i32) -> (i32, i32) {
    %c0_i32 = arith.constant 0 : i32
    %c0_i32_0 = arith.constant 0 : i32
    %c0_i32_1 = arith.constant 0 : i32
    return %c0_i32, %c0_i32_0 : i32, i32
  }
  func.func @transform_3(%arg0: i32) -> (i32, i32) {
    %c0_i32 = arith.constant 0 : i32
    %c0_i32_0 = arith.constant 0 : i32
    %c0_i32_1 = arith.constant 0 : i32
    return %c0_i32, %c0_i32_0 : i32, i32
  }
  func.func @transform_4(%arg0: i32) -> (i32, i32) {
    %c0_i32 = arith.constant 0 : i32
    %c0_i32_0 = arith.constant 0 : i32
    %c0_i32_1 = arith.constant 0 : i32
    return %c0_i32, %c0_i32_0 : i32, i32
  }
  func.func @transform_5(%arg0: i32) -> (i32, i32) {
    %c0_i32 = arith.constant 0 : i32
    %c0_i32_0 = arith.constant 0 : i32
    %c0_i32_1 = arith.constant 0 : i32
    return %c0_i32, %c0_i32_0 : i32, i32
  }
  func.func @transform_6(%arg0: i32) -> (i32, i32) {
    %c0_i32 = arith.constant 0 : i32
    %c0_i32_0 = arith.constant 0 : i32
    %c0_i32_1 = arith.constant 0 : i32
    return %c0_i32, %c0_i32_0 : i32, i32
  }
  func.func @transform_7(%arg0: i32) -> (i32, i32) {
    %c0_i32 = arith.constant 0 : i32
    %c0_i32_0 = arith.constant 0 : i32
    return %c0_i32, %arg0 : i32, i32
  }
}

</mosaic_0001>

<llo_original>
// kernel: q_network_forward.1
$region0: #{q_network_forward.1}
  #allocation0 [shape = 'u32[]', space=smem, size = 0x4, offset = 0x4, fixed_abs, tag = 'smem constant byte address 0x4 - core index']
  #allocation1 [shape = 'u32[144,128]{1,0:T(1,128)}', space=vmem, size = 0x12000, scoped, tag = 'internal scratch']
  #allocation2 [shape = 'f32[1,1]{1,0:T(1,128)S(1)}', space=vmem, size = 0x200, scoped, tag = 'scoped memory for q_network_forward.1']
  %s0 = inlined_call_operand.vmem [shape: f32[8,128], index: 0, kind: input, shape index: {}]
  %s1 = inlined_call_operand.vmem [shape: f32[32,8], index: 1, kind: input, shape index: {}]
  %s2 = inlined_call_operand.vmem [shape: f32[32,1], index: 2, kind: input, shape index: {}]
  %s3 = inlined_call_operand.vmem [shape: f32[64,32], index: 3, kind: input, shape index: {}]
  %s4 = inlined_call_operand.vmem [shape: f32[64,1], index: 4, kind: input, shape index: {}]
  %s5 = inlined_call_operand.vmem [shape: f32[1,64], index: 5, kind: input, shape index: {}]
  %s6 = inlined_call_operand.<no memory space> [shape: f32[1,1], index: 6, kind: input, shape index: {}]
  %s7 = inlined_call_operand.vmem [shape: f32[1,128], index: 7, kind: output, shape index: {}]
  %s8 = sld [smem:[#allocation0]]
  $region38: #{q_network_forward.1} parent=0
    _
  %s10 = ssub.s32 1, %s8
  %s11 = scalar_select 0, %s10, %s8
  %v12 = vstv %s6
  %13 = vst [vmem:[#allocation2] sm:$0x1] %v12
  // Predicated region
  $region2: #{q_network_forward.1} parent=0 // pred_check
    _
  $region3: #{q_network_forward.1} parent=0 // pred_check_branch
    %15 = sbr.rel (0) target = $region5
  $region4: #{q_network_forward.1} parent=0 // pred_region
    _
  $region5: #{q_network_forward.1} parent=0 // pred_fallthru
    _
  // Predicated region
  $region6: #{q_network_forward.1} parent=0 // pred_check
    _
  $region7: #{q_network_forward.1} parent=0 // pred_check_branch
    %17 = sbr.rel (0) target = $region9
  $region8: #{q_network_forward.1} parent=0 // pred_region
    _
  $region9: #{q_network_forward.1} parent=0 // pred_fallthru
    _
  // Predicated region
  $region10: #{q_network_forward.1} parent=0 // pred_check
    _
  $region11: #{q_network_forward.1} parent=0 // pred_check_branch
    %19 = sbr.rel (0) target = $region13
  $region12: #{q_network_forward.1} parent=0 // pred_region
    _
  $region13: #{q_network_forward.1} parent=0 // pred_fallthru
    _
  // Predicated region
  $region14: #{q_network_forward.1} parent=0 // pred_check
    _
  $region15: #{q_network_forward.1} parent=0 // pred_check_branch
    %21 = sbr.rel (0) target = $region17
  $region16: #{q_network_forward.1} parent=0 // pred_region
    _
  $region17: #{q_network_forward.1} parent=0 // pred_fallthru
    _
  // Predicated region
  $region18: #{q_network_forward.1} parent=0 // pred_check
    _
  $region19: #{q_network_forward.1} parent=0 // pred_check_branch
    %23 = sbr.rel (0) target = $region21
  $region20: #{q_network_forward.1} parent=0 // pred_region
    _
  $region21: #{q_network_forward.1} parent=0 // pred_fallthru
    _
  // Predicated region
  $region22: #{q_network_forward.1} parent=0 // pred_check
    _
  $region23: #{q_network_forward.1} parent=0 // pred_check_branch
    %25 = sbr.rel (0) target = $region25
  $region24: #{q_network_forward.1} parent=0 // pred_region
    _
  $region25: #{q_network_forward.1} parent=0 // pred_fallthru
    _
  // Predicated region
  $region26: #{q_network_forward.1} parent=0 // pred_check
    _
  $region27: #{q_network_forward.1} parent=0 // pred_check_branch
    %27 = sbr.rel (0) target = $region29
  $region28: #{q_network_forward.1} parent=0 // pred_region
    _
  $region29: #{q_network_forward.1} parent=0 // pred_fallthru
    _
  %v28 = vld [vmem:[%s0] sm:$0xff]
  %v29 = vld [vmem:[%s1] sm:$0xff]
  %v30 = vld [vmem:[%s1 + $0x8] sm:$0xff]
  %v31 = vld [vmem:[%s1 + $0x10] sm:$0xff]
  %v32 = vld [vmem:[%s1 + $0x18] sm:$0xff]
  %v33 = vld [vmem:[%s2] sm:$0xff]
  %v34 = vld [vmem:[%s2 + $0x8] sm:$0xff]
  %v35 = vld [vmem:[%s2 + $0x10] sm:$0xff]
  %v36 = vld [vmem:[%s2 + $0x18] sm:$0xff]
  %38 = vset.pattern.permute.xlu0 0
  %39 = vperm.xlu0 %38, %v33
  %v40 = vpop.permute.xlu0 %39
  %43 = vset.pattern.permute.xlu0 0
  %44 = vperm.xlu0 %43, %v34
  %v45 = vpop.permute.xlu0 %44
  %48 = vset.pattern.permute.xlu0 0
  %49 = vperm.xlu0 %48, %v35
  %v50 = vpop.permute.xlu0 %49
  %53 = vset.pattern.permute.xlu0 0
  %54 = vperm.xlu0 %53, %v36
  %v55 = vpop.permute.xlu0 %54
  %vm57 = vcmask 64512
  %v59 = vsel %vm57, %v29, 0
  %v62 = vsel %vm57, %v30, 0
  %v65 = vsel %vm57, %v31, 0
  %v68 = vsel %vm57, %v32, 0
  %70 = vmatprep.subr.mxu0 0.0
  %71 = vmatpush1.msra.mxu0 %v28
  %72 = vmatprep.subr.mxu0 0.0
  %73 = vmatpush1.msra.mxu0 0.0
  %74 = vmatprep.subr.mxu0 0.0
  %75 = vmatpush1.msra.mxu0 0.0
  %76 = vmatprep.subr.mxu0 0.0
  %77 = vmatpush1.msra.mxu0 0.0
  %78 = vmatprep.subr.mxu0 0.0
  %79 = vmatpush1.msra.mxu0 0.0
  %80 = vmatprep.subr.mxu0 0.0
  %81 = vmatpush1.msra.mxu0 0.0
  %82 = vmatprep.subr.mxu0 0.0
  %83 = vmatpush1.msra.mxu0 0.0
  %84 = vmatprep.subr.mxu0 0.0
  %85 = vmatpush1.msra.mxu0 0.0
  %86 = vmatprep.subr.mxu0 0.0
  %87 = vmatpush1.msra.mxu0 0.0
  %88 = vmatprep.subr.mxu0 0.0
  %89 = vmatpush1.msra.mxu0 0.0
  %90 = vmatprep.subr.mxu0 0.0
  %91 = vmatpush1.msra.mxu0 0.0
  %92 = vmatprep.subr.mxu0 0.0
  %93 = vmatpush1.msra.mxu0 0.0
  %94 = vmatprep.subr.mxu0 0.0
  %95 = vmatpush1.msra.mxu0 0.0
  %96 = vmatprep.subr.mxu0 0.0
  %97 = vmatpush1.msra.mxu0 0.0
  %98 = vmatprep.subr.mxu0 0.0
  %99 = vmatpush1.msra.mxu0 0.0
  %100 = vmatprep.subr.mxu0 0.0
  %101 = vmatpush1.msra.mxu0 0.0
  %102 = vmatprep.subr.mxu0 0.0
  %103 = vmatpush1.msra.mxu0 0.0
  %104 = vmatprep.subr.mxu0 0.0
  %105 = vmatpush1.msra.mxu0 0.0
  %106 = vmatprep.subr.mxu0 0.0
  %107 = vmatpush1.msra.mxu0 0.0
  %108 = vmatprep.subr.mxu0 0.0
  %109 = vmatpush1.msra.mxu0 0.0
  %110 = vmatprep.subr.mxu0 0.0
  %111 = vmatpush1.msra.mxu0 0.0
  %112 = vmatprep.subr.mxu0 0.0
  %113 = vmatpush1.msra.mxu0 0.0
  %114 = vmatprep.subr.mxu0 0.0
  %115 = vmatpush1.msra.mxu0 0.0
  %116 = vmatprep.subr.mxu0 0.0
  %117 = vmatpush1.msra.mxu0 0.0
  %118 = vmatprep.subr.mxu0 0.0
  %119 = vmatpush1.msra.mxu0 0.0
  %120 = vmatprep.subr.mxu0 0.0
  %121 = vmatpush1.msra.mxu0 0.0
  %122 = vmatprep.subr.mxu0 0.0
  %123 = vmatpush1.msra.mxu0 0.0
  %124 = vmatprep.subr.mxu0 0.0
  %125 = vmatpush1.msra.mxu0 0.0
  %126 = vmatprep.subr.mxu0 0.0
  %127 = vmatpush1.msra.mxu0 0.0
  %128 = vmatprep.subr.mxu0 0.0
  %129 = vmatpush1.msra.mxu0 0.0
  %130 = vmatprep.subr.mxu0 0.0
  %131 = vmatpush1.msra.mxu0 0.0
  %132 = vmatprep.subr.mxu0 0.0
  %133 = vmatpush1.msra.mxu0 0.0
  %134 = vmatprep.mubr.f32.mxu0 0.0
  %135 = vmatmul.mubr.f32.gmra.mrb[0].mxu0 %v59
  %v136 = vpop.f32.mrb[0].mxu0
  %v137 = vadd.f32 %v40, %v136
  %v138 = vpop.f32.mrb[0].mxu0
  %139 = vmatprep.mubr.f32.mxu0 0.0
  %140 = vmatmul.mubr.f32.gmra.mrb[0].mxu0 %v62
  %v141 = vpop.f32.mrb[0].mxu0
  %v142 = vadd.f32 %v45, %v141
  %v143 = vpop.f32.mrb[0].mxu0
  %144 = vmatprep.mubr.f32.mxu0 0.0
  %145 = vmatmul.mubr.f32.gmra.mrb[0].mxu0 %v65
  %v146 = vpop.f32.mrb[0].mxu0
  %v147 = vadd.f32 %v50, %v146
  %v148 = vpop.f32.mrb[0].mxu0
  %149 = vmatprep.mubr.f32.mxu0 0.0
  %150 = vmatmul.mubr.f32.gmra.mrb[0].mxu0 %v68
  %v151 = vpop.f32.mrb[0].mxu0
  %v152 = vadd.f32 %v55, %v151
  %v153 = vpop.f32.mrb[0].mxu0
  %154 = vdwg.mxu0
  %v155 = vtanh.pop %v137
  %v156 = vtanh.pop %v142
  %v157 = vtanh.pop %v147
  %v158 = vtanh.pop %v152
  %v159 = vld [vmem:[%s3] sm:$0xff]
  %v160 = vld [vmem:[%s3 + $0x8] sm:$0xff]
  %v161 = vld [vmem:[%s3 + $0x10] sm:$0xff]
  %v162 = vld [vmem:[%s3 + $0x18] sm:$0xff]
  %v163 = vld [vmem:[%s3 + $0x20] sm:$0xff]
  %v164 = vld [vmem:[%s3 + $0x28] sm:$0xff]
  %v165 = vld [vmem:[%s3 + $0x30] sm:$0xff]
  %v166 = vld [vmem:[%s3 + $0x38] sm:$0xff]
  %v167 = vld [vmem:[%s4] sm:$0xff]
  %v168 = vld [vmem:[%s4 + $0x8] sm:$0xff]
  %v169 = vld [vmem:[%s4 + $0x10] sm:$0xff]
  %v170 = vld [vmem:[%s4 + $0x18] sm:$0xff]
  %v171 = vld [vmem:[%s4 + $0x20] sm:$0xff]
  %v172 = vld [vmem:[%s4 + $0x28] sm:$0xff]
  %v173 = vld [vmem:[%s4 + $0x30] sm:$0xff]
  %v174 = vld [vmem:[%s4 + $0x38] sm:$0xff]
  %176 = vset.pattern.permute.xlu0 0
  %177 = vperm.xlu0 %176, %v167
  %v178 = vpop.permute.xlu0 %177
  %181 = vset.pattern.permute.xlu0 0
  %182 = vperm.xlu0 %181, %v168
  %v183 = vpop.permute.xlu0 %182
  %186 = vset.pattern.permute.xlu0 0
  %187 = vperm.xlu0 %186, %v169
  %v188 = vpop.permute.xlu0 %187
  %191 = vset.pattern.permute.xlu0 0
  %192 = vperm.xlu0 %191, %v170
  %v193 = vpop.permute.xlu0 %192
  %196 = vset.pattern.permute.xlu0 0
  %197 = vperm.xlu0 %196, %v171
  %v198 = vpop.permute.xlu0 %197
  %201 = vset.pattern.permute.xlu0 0
  %202 = vperm.xlu0 %201, %v172
  %v203 = vpop.permute.xlu0 %202
  %206 = vset.pattern.permute.xlu0 0
  %207 = vperm.xlu0 %206, %v173
  %v208 = vpop.permute.xlu0 %207
  %211 = vset.pattern.permute.xlu0 0
  %212 = vperm.xlu0 %211, %v174
  %v213 = vpop.permute.xlu0 %212
  %vm215 = vcmask 261120
  %v217 = vsel %vm215, %v159, 0
  %v220 = vsel %vm215, %v160, 0
  %v223 = vsel %vm215, %v161, 0
  %v226 = vsel %vm215, %v162, 0
  %v229 = vsel %vm215, %v163, 0
  %v232 = vsel %vm215, %v164, 0
  %v235 = vsel %vm215, %v165, 0
  %v238 = vsel %vm215, %v166, 0
  %240 = vmatprep.subr.mxu0 0.0
  %241 = vmatpush1.msra.mxu0 %v155
  %242 = vmatprep.subr.mxu0 0.0
  %243 = vmatpush1.msra.mxu0 %v156
  %244 = vmatprep.subr.mxu0 0.0
  %245 = vmatpush1.msra.mxu0 %v157
  %246 = vmatprep.subr.mxu0 0.0
  %247 = vmatpush1.msra.mxu0 %v158
  %248 = vmatprep.subr.mxu0 0.0
  %249 = vmatpush1.msra.mxu0 0.0
  %250 = vmatprep.subr.mxu0 0.0
  %251 = vmatpush1.msra.mxu0 0.0
  %252 = vmatprep.subr.mxu0 0.0
  %253 = vmatpush1.msra.mxu0 0.0
  %254 = vmatprep.subr.mxu0 0.0
  %255 = vmatpush1.msra.mxu0 0.0
  %256 = vmatprep.subr.mxu0 0.0
  %257 = vmatpush1.msra.mxu0 0.0
  %258 = vmatprep.subr.mxu0 0.0
  %259 = vmatpush1.msra.mxu0 0.0
  %260 = vmatprep.subr.mxu0 0.0
  %261 = vmatpush1.msra.mxu0 0.0
  %262 = vmatprep.subr.mxu0 0.0
  %263 = vmatpush1.msra.mxu0 0.0
  %264 = vmatprep.subr.mxu0 0.0
  %265 = vmatpush1.msra.mxu0 0.0
  %266 = vmatprep.subr.mxu0 0.0
  %267 = vmatpush1.msra.mxu0 0.0
  %268 = vmatprep.subr.mxu0 0.0
  %269 = vmatpush1.msra.mxu0 0.0
  %270 = vmatprep.subr.mxu0 0.0
  %271 = vmatpush1.msra.mxu0 0.0
  %272 = vmatprep.subr.mxu0 0.0
  %273 = vmatpush1.msra.mxu0 0.0
  %274 = vmatprep.subr.mxu0 0.0
  %275 = vmatpush1.msra.mxu0 0.0
  %276 = vmatprep.subr.mxu0 0.0
  %277 = vmatpush1.msra.mxu0 0.0
  %278 = vmatprep.subr.mxu0 0.0
  %279 = vmatpush1.msra.mxu0 0.0
  %280 = vmatprep.subr.mxu0 0.0
  %281 = vmatpush1.msra.mxu0 0.0
  %282 = vmatprep.subr.mxu0 0.0
  %283 = vmatpush1.msra.mxu0 0.0
  %284 = vmatprep.subr.mxu0 0.0
  %285 = vmatpush1.msra.mxu0 0.0
  %286 = vmatprep.subr.mxu0 0.0
  %287 = vmatpush1.msra.mxu0 0.0
  %288 = vmatprep.subr.mxu0 0.0
  %289 = vmatpush1.msra.mxu0 0.0
  %290 = vmatprep.subr.mxu0 0.0
  %291 = vmatpush1.msra.mxu0 0.0
  %292 = vmatprep.subr.mxu0 0.0
  %293 = vmatpush1.msra.mxu0 0.0
  %294 = vmatprep.subr.mxu0 0.0
  %295 = vmatpush1.msra.mxu0 0.0
  %296 = vmatprep.subr.mxu0 0.0
  %297 = vmatpush1.msra.mxu0 0.0
  %298 = vmatprep.subr.mxu0 0.0
  %299 = vmatpush1.msra.mxu0 0.0
  %300 = vmatprep.subr.mxu0 0.0
  %301 = vmatpush1.msra.mxu0 0.0
  %302 = vmatprep.subr.mxu0 0.0
  %303 = vmatpush1.msra.mxu0 0.0
  %304 = vmatprep.mubr.f32.mxu0 0.0
  %305 = vmatmul.mubr.f32.gmra.mrb[0].mxu0 %v217
  %v306 = vpop.f32.mrb[0].mxu0
  %v307 = vadd.f32 %v178, %v306
  %v308 = vpop.f32.mrb[0].mxu0
  %309 = vmatprep.mubr.f32.mxu0 0.0
  %310 = vmatmul.mubr.f32.gmra.mrb[0].mxu0 %v220
  %v311 = vpop.f32.mrb[0].mxu0
  %v312 = vadd.f32 %v183, %v311
  %v313 = vpop.f32.mrb[0].mxu0
  %314 = vmatprep.mubr.f32.mxu0 0.0
  %315 = vmatmul.mubr.f32.gmra.mrb[0].mxu0 %v223
  %v316 = vpop.f32.mrb[0].mxu0
  %v317 = vadd.f32 %v188, %v316
  %v318 = vpop.f32.mrb[0].mxu0
  %319 = vmatprep.mubr.f32.mxu0 0.0
  %320 = vmatmul.mubr.f32.gmra.mrb[0].mxu0 %v226
  %v321 = vpop.f32.mrb[0].mxu0
  %v322 = vadd.f32 %v193, %v321
  %v323 = vpop.f32.mrb[0].mxu0
  %324 = vmatprep.mubr.f32.mxu0 0.0
  %325 = vmatmul.mubr.f32.gmra.mrb[0].mxu0 %v229
  %v326 = vpop.f32.mrb[0].mxu0
  %v327 = vadd.f32 %v198, %v326
  %v328 = vpop.f32.mrb[0].mxu0
  %329 = vmatprep.mubr.f32.mxu0 0.0
  %330 = vmatmul.mubr.f32.gmra.mrb[0].mxu0 %v232
  %v331 = vpop.f32.mrb[0].mxu0
  %v332 = vadd.f32 %v203, %v331
  %v333 = vpop.f32.mrb[0].mxu0
  %334 = vmatprep.mubr.f32.mxu0 0.0
  %335 = vmatmul.mubr.f32.gmra.mrb[0].mxu0 %v235
  %v336 = vpop.f32.mrb[0].mxu0
  %v337 = vadd.f32 %v208, %v336
  %v338 = vpop.f32.mrb[0].mxu0
  %339 = vmatprep.mubr.f32.mxu0 0.0
  %340 = vmatmul.mubr.f32.gmra.mrb[0].mxu0 %v238
  %v341 = vpop.f32.mrb[0].mxu0
  %v342 = vadd.f32 %v213, %v341
  %v343 = vpop.f32.mrb[0].mxu0
  %344 = vdwg.mxu0
  %v345 = vtanh.pop %v307
  %v346 = vtanh.pop %v312
  %v347 = vtanh.pop %v317
  %v348 = vtanh.pop %v322
  %v349 = vtanh.pop %v327
  %v350 = vtanh.pop %v332
  %v351 = vtanh.pop %v337
  %v352 = vtanh.pop %v342
  %v353 = vld [vmem:[%s5] sm:$0x1]
  %v354 = vld [vmem:[#allocation2] sm:$0x1]
  %356 = vset.pattern.permute.xlu0 0
  %357 = vperm.xlu0 %356, %v354
  %v358 = vpop.permute.xlu0 %357
  %v360 = vlaneseq
  %v361 = vshrl.u32 %v360, 7
  %v362 = vsub.s32 0, %v361
  %v363 = vrot.slane %v358, %v362
  %vm364 = vcmask 523264
  %v366 = vsel %vm364, %v353, 0
  %368 = vmatprep.subr.mxu0 0.0
  %369 = vmatpush1.msra.mxu0 %v345
  %370 = vmatprep.subr.mxu0 0.0
  %371 = vmatpush1.msra.mxu0 %v346
  %372 = vmatprep.subr.mxu0 0.0
  %373 = vmatpush1.msra.mxu0 %v347
  %374 = vmatprep.subr.mxu0 0.0
  %375 = vmatpush1.msra.mxu0 %v348
  %376 = vmatprep.subr.mxu0 0.0
  %377 = vmatpush1.msra.mxu0 %v349
  %378 = vmatprep.subr.mxu0 0.0
  %379 = vmatpush1.msra.mxu0 %v350
  %380 = vmatprep.subr.mxu0 0.0
  %381 = vmatpush1.msra.mxu0 %v351
  %382 = vmatprep.subr.mxu0 0.0
  %383 = vmatpush1.msra.mxu0 %v352
  %384 = vmatprep.subr.mxu0 0.0
  %385 = vmatpush1.msra.mxu0 0.0
  %386 = vmatprep.subr.mxu0 0.0
  %387 = vmatpush1.msra.mxu0 0.0
  %388 = vmatprep.subr.mxu0 0.0
  %389 = vmatpush1.msra.mxu0 0.0
  %390 = vmatprep.subr.mxu0 0.0
  %391 = vmatpush1.msra.mxu0 0.0
  %392 = vmatprep.subr.mxu0 0.0
  %393 = vmatpush1.msra.mxu0 0.0
  %394 = vmatprep.subr.mxu0 0.0
  %395 = vmatpush1.msra.mxu0 0.0
  %396 = vmatprep.subr.mxu0 0.0
  %397 = vmatpush1.msra.mxu0 0.0
  %398 = vmatprep.subr.mxu0 0.0
  %399 = vmatpush1.msra.mxu0 0.0
  %400 = vmatprep.subr.mxu0 0.0
  %401 = vmatpush1.msra.mxu0 0.0
  %402 = vmatprep.subr.mxu0 0.0
  %403 = vmatpush1.msra.mxu0 0.0
  %404 = vmatprep.subr.mxu0 0.0
  %405 = vmatpush1.msra.mxu0 0.0
  %406 = vmatprep.subr.mxu0 0.0
  %407 = vmatpush1.msra.mxu0 0.0
  %408 = vmatprep.subr.mxu0 0.0
  %409 = vmatpush1.msra.mxu0 0.0
  %410 = vmatprep.subr.mxu0 0.0
  %411 = vmatpush1.msra.mxu0 0.0
  %412 = vmatprep.subr.mxu0 0.0
  %413 = vmatpush1.msra.mxu0 0.0
  %414 = vmatprep.subr.mxu0 0.0
  %415 = vmatpush1.msra.mxu0 0.0
  %416 = vmatprep.subr.mxu0 0.0
  %417 = vmatpush1.msra.mxu0 0.0
  %418 = vmatprep.subr.mxu0 0.0
  %419 = vmatpush1.msra.mxu0 0.0
  %420 = vmatprep.subr.mxu0 0.0
  %421 = vmatpush1.msra.mxu0 0.0
  %422 = vmatprep.subr.mxu0 0.0
  %423 = vmatpush1.msra.mxu0 0.0
  %424 = vmatprep.subr.mxu0 0.0
  %425 = vmatpush1.msra.mxu0 0.0
  %426 = vmatprep.subr.mxu0 0.0
  %427 = vmatpush1.msra.mxu0 0.0
  %428 = vmatprep.subr.mxu0 0.0
  %429 = vmatpush1.msra.mxu0 0.0
  %430 = vmatprep.subr.mxu0 0.0
  %431 = vmatpush1.msra.mxu0 0.0
  %432 = vmatprep.mubr.f32.mxu0 0.0
  %433 = vmatmul.mubr.f32.gmra.mrb[0].mxu0 %v366
  %v434 = vpop.f32.mrb[0].mxu0
  %v435 = vadd.f32 %v363, %v434
  %v436 = vpop.f32.mrb[0].mxu0
  %437 = vdwg.mxu0
  %438 = vst [vmem:[%s7] sm:$0x1] %v435
  // Predicated region
  $region30: #{q_network_forward.1} parent=0 // pred_check
    _
  $region31: #{q_network_forward.1} parent=0 // pred_check_branch
    %440 = sbr.rel (0) target = $region33
  $region32: #{q_network_forward.1} parent=0 // pred_region
    _
  $region33: #{q_network_forward.1} parent=0 // pred_fallthru
    _
  // Predicated region
  $region34: #{q_network_forward.1} parent=0 // pred_check
    _
  $region35: #{q_network_forward.1} parent=0 // pred_check_branch
    %442 = sbr.rel (0) target = $region37
  $region36: #{q_network_forward.1} parent=0 // pred_region
    _
  $region37: #{q_network_forward.1} parent=0 // pred_fallthru
    _

</llo_original>
